<compile_context>
chip_gen: v7x
topology: tpu7x:2x2x1
jax: 0.10.0
libtpu: 0.0.40
codegen_flags: <defaults>
</compile_context>

<pallas_src>
import functools

import jax
import jax.numpy as jnp
from jax import lax
from jax.experimental import pallas as pl
from jax.experimental.pallas import tpu as pltpu


def _round_up(x, m):
    return (x + m - 1) // m * m


def _attn_kernel(x_ref, h_ref, w1t_ref, b1_ref, w2et_ref, w2dt_ref, b2_ref, out_ref):
    # x_ref   : (Bblk, S, E)      encoder outputs for this batch block (compute dtype)
    # h_ref   : (Bblk*Tp, D)      decoder hidden, batch-flattened      (compute dtype)
    # w1t_ref : (D, E)            projHidden2Encoder weight, pre-transposed
    # b1_ref  : (1, E)            f32 bias
    # w2et_ref: (E, Apad)         proj2Output weight (encoder half), transposed + padded
    # w2dt_ref: (D, Apad)         proj2Output weight (decoder half), transposed + padded
    # b2_ref  : (1, Apad)         f32 bias (zero padded)
    # out_ref : (Bblk*Tp, Apad)
    bblk, s, e = x_ref.shape
    bt, d = h_ref.shape
    t = bt // bblk

    x = x_ref[...]                      # (Bblk, S, E)
    h = h_ref[...]                      # (Bblk*Tp, D)  -- big M dim for the MXU

    # projHidden2Encoder: (Bblk*Tp, D) @ (D, E) + b1   (f32 accumulation)
    hE = jnp.dot(h, w1t_ref[...], preferred_element_type=jnp.float32) + b1_ref[...]
    # Tp is a multiple of the sublane packing, so this reshape is a free view.
    hE3 = hE.reshape(bblk, t, e).astype(x.dtype)       # f32 reshape, then cast

    # scores[b, t, s] = hE[b, t, :] . x[b, s, :]   (contract E; no transposes)
    scores = lax.dot_general(
        hE3, x,
        dimension_numbers=(((2,), (2,)), ((0,), (0,))),
        preferred_element_type=jnp.float32)            # (Bblk, Tp, S)

    # numerically stable softmax over S (f32 math); denominator on the EUP slot
    m = jnp.max(scores, axis=-1, keepdims=True)
    p = jnp.exp(scores - m)
    attn = p * pl.reciprocal(jnp.sum(p, axis=-1, keepdims=True), approx=True)

    # context[b, t, :] = sum_s attn[b, t, s] * x[b, s, :]
    context = lax.dot_general(
        attn.astype(x.dtype), x,
        dimension_numbers=(((2,), (1,)), ((0,), (0,))),
        preferred_element_type=jnp.float32)            # (Bblk, Tp, E)
    ctx = context.reshape(bt, e).astype(w2et_ref.dtype)

    # proj2Output on concat([context, h]) == ctx @ W2e^T + h @ W2d^T + b2
    out = (jnp.dot(ctx, w2et_ref[...], preferred_element_type=jnp.float32)
           + jnp.dot(h, w2dt_ref[...], preferred_element_type=jnp.float32)
           + b2_ref[...])                              # (Bblk*Tp, Apad)

    out_ref[...] = out.astype(out_ref.dtype)


def _default_vmem_limit():
    """~62% of physical VMEM, capped at 64 MiB (40 MiB on v7x, 64 MiB on v5e/v6e)."""
    phys = 128 << 20
    try:
        phys = int(getattr(pltpu.get_tpu_info(), "vmem_capacity_bytes", phys))
    except Exception:
        pass
    return min(64 << 20, (phys * 5) // 8)


def _max_bblk_for_vmem(T_pad, S, E, D, a_pad, cd_bytes, out_bytes, vmem_limit_bytes):
    """Largest batch block whose per-step footprint fits the VMEM budget."""
    # grid-invariant operands: single-buffered (pl.Buffered(1)), f32 biases
    weights = (D * E + E * a_pad + D * a_pad) * cd_bytes + (E + a_pad) * 4
    # streamed operands + output are double-buffered; f32 temporaries live once
    per_b = 2 * (S * E + T_pad * D) * cd_bytes
    per_b += 2 * T_pad * a_pad * out_bytes
    per_b += T_pad * (2 * E + 2 * S + a_pad) * 4
    budget = int(vmem_limit_bytes * 0.7) - weights
    return max(1, budget // max(per_b, 1))


def _pick_block_b(B, T_pad):
    """Fill the MXU M dim (>=256 rows) without padding past the real batch,
    and keep >=2 grid steps whenever B >= 2 so v7x's two TCs both get work."""
    bblk = min(pl.cdiv(256, T_pad), B)
    if B >= 2:
        bblk = min(bblk, pl.cdiv(B, 2))
    return max(1, bblk)


def _single_buffered_spec(shape):
    """Grid-invariant operand: constant index_map, no double-buffering."""
    idx = lambda i: (0,) * len(shape)
    try:
        return pl.BlockSpec(shape, idx, pipeline_mode=pl.Buffered(1))
    except (AttributeError, TypeError):   # older API without pipeline_mode
        return pl.BlockSpec(shape, idx)


def ingr_to_instr_attention(ingr_outputs, decoder_hidden, params, *,
                            block_b=None,
                            compute_dtype=jnp.bfloat16,
                            out_dtype=jnp.float32,
                            vmem_limit_bytes=None):
    """ingr_outputs: [S, B, E], decoder_hidden: [T, B, D] -> [T, B, A]."""
    w1, b1, w2, b2 = params["w1"], params["b1"], params["w2"], params["b2"]
    S, B, E = ingr_outputs.shape
    T, B2, D = decoder_hidden.shape
    assert B == B2
    A = w2.shape[0]

    cd = jnp.dtype(compute_dtype)
    cd_bytes = cd.itemsize
    out_bytes = jnp.dtype(out_dtype).itemsize
    a_pad = _round_up(A, 128)                      # lane-dense output stores
    sub = 8 if cd_bytes >= 4 else 16               # sublane packing (f32 / bf16)
    T_pad = _round_up(T, sub)                      # free in-kernel reshapes, valid blocks

    if vmem_limit_bytes is None:
        vmem_limit_bytes = _default_vmem_limit()

    if block_b is None:
        bblk = _pick_block_b(B, T_pad)
    else:
        bblk = max(1, min(int(block_b), B))
    bblk = min(bblk, _max_bblk_for_vmem(T_pad, S, E, D, a_pad,
                                        cd_bytes, out_bytes, vmem_limit_bytes))
    b_pad = _round_up(B, bblk)
    grid = b_pad // bblk

    # Pre-transposed weights (no in-kernel .T); output dim zero-padded so the
    # padded output columns are exactly zero.
    w1t = w1.T.astype(cd)                                              # (D, E)
    w2et = jnp.pad(w2[:, :E].T.astype(cd), ((0, 0), (0, a_pad - A)))   # (E, Apad)
    w2dt = jnp.pad(w2[:, E:].T.astype(cd), ((0, 0), (0, a_pad - A)))   # (D, Apad)
    b1_2d = b1.reshape(1, E).astype(jnp.float32)
    b2_2d = jnp.pad(b2.astype(jnp.float32), (0, a_pad - A)).reshape(1, a_pad)

    # Batch-first activations: one dense XLA transpose pass each, then the
    # kernel reads contiguous slabs (no narrow strided DMA).  Pad batch to a
    # block multiple and T to the sublane packing (padded rows stripped later).
    x = jnp.transpose(ingr_outputs, (1, 0, 2)).astype(cd)    # [B, S, E]
    h = jnp.transpose(decoder_hidden, (1, 0, 2)).astype(cd)  # [B, T, D]
    x = jnp.pad(x, ((0, b_pad - B), (0, 0), (0, 0)))
    h = jnp.pad(h, ((0, b_pad - B), (0, T_pad - T), (0, 0)))
    h_flat = h.reshape(b_pad * T_pad, D)                     # free row-major view

    out_flat = pl.pallas_call(
        _attn_kernel,
        out_shape=jax.ShapeDtypeStruct((b_pad * T_pad, a_pad), out_dtype),
        grid_spec=pltpu.PrefetchScalarGridSpec(
            num_scalar_prefetch=0,
            grid=(grid,),
            in_specs=[
                pl.BlockSpec((bblk, S, E), lambda i: (i, 0, 0)),        # streamed
                pl.BlockSpec((bblk * T_pad, D), lambda i: (i, 0)),      # streamed
                _single_buffered_spec((D, E)),                           # invariant
                _single_buffered_spec((1, E)),
                _single_buffered_spec((E, a_pad)),
                _single_buffered_spec((D, a_pad)),
                _single_buffered_spec((1, a_pad)),
            ],
            out_specs=pl.BlockSpec((bblk * T_pad, a_pad), lambda i: (i, 0)),
        ),
        compiler_params=pltpu.CompilerParams(
            dimension_semantics=("parallel",),       # megacore-shardable on v7x
            vmem_limit_bytes=int(vmem_limit_bytes),
        ),
    )(x, h_flat, w1t, b1_2d, w2et, w2dt, b2_2d)

    out = out_flat.reshape(b_pad, T_pad, a_pad)[:B, :T, :A]  # strip padding
    return jnp.transpose(out, (1, 0, 2))                     # [T, B, A]


def init_params(key, decoder_hidden_dim, encoder_output_dim, attention_output_dim):
    """Deterministic init matching nn.Linear shapes (uniform +/- 1/sqrt(fan_in))."""
    D, E, A = decoder_hidden_dim, encoder_output_dim, attention_output_dim
    k1, k2, k3, k4 = jax.random.split(key, 4)
    lim1 = 1.0 / jnp.sqrt(D)
    lim2 = 1.0 / jnp.sqrt(E + D)
    return {
        "w1": jax.random.uniform(k1, (E, D), jnp.float32, -lim1, lim1),
        "b1": jax.random.uniform(k2, (E,), jnp.float32, -lim1, lim1),
        "w2": jax.random.uniform(k3, (A, E + D), jnp.float32, -lim2, lim2),
        "b2": jax.random.uniform(k4, (A,), jnp.float32, -lim2, lim2),
    }


def _reference(ingr_outputs, decoder_hidden, params, compute_dtype=jnp.float32):
    """Pure-JAX transliteration of the PyTorch forward, with the same operand
    casts as the kernel (f32 accumulation) so the bf16 path can be checked."""
    w1, b1, w2, b2 = params["w1"], params["b1"], params["w2"], params["b2"]
    cd = compute_dtype
    E = ingr_outputs.shape[-1]
    ref = decoder_hidden                                            # [T, B, D]
    hE = jnp.matmul(decoder_hidden.astype(cd), w1.T.astype(cd),
                    preferred_element_type=jnp.float32) + b1        # [T, B, E]
    hE = jnp.transpose(hE, (1, 2, 0))                               # [B, E, T]
    ingr = jnp.transpose(ingr_outputs, (1, 0, 2))                   # [B, S, E]
    align = jnp.einsum("bse,bet->bst", ingr.astype(cd), hE.astype(cd),
                       preferred_element_type=jnp.float32)          # [B, S, T]
    align = jnp.transpose(align, (0, 2, 1))                         # [B, T, S]
    attn = jax.nn.softmax(align, axis=2)
    ctx = jnp.einsum("bts,bse->bte", attn.astype(cd), ingr.astype(cd),
                     preferred_element_type=jnp.float32)            # [B, T, E]
    ctx = jnp.transpose(ctx, (1, 0, 2))                             # [T, B, E]
    out = (jnp.matmul(ctx.astype(cd), w2[:, :E].T.astype(cd),
                      preferred_element_type=jnp.float32)
           + jnp.matmul(ref.astype(cd), w2[:, E:].T.astype(cd),
                        preferred_element_type=jnp.float32)
           + b2)                                                    # [T, B, A]
    return out


if __name__ == "__main__":
    # small, module-consistent shapes
    S, T, B = 8, 8, 2            # ingredient seq len, instruction seq len, batch
    D, E, A = 32, 32, 16         # decoder_hidden_dim, encoder_output_dim, attention_output_dim

    key = jax.random.PRNGKey(0)
    kp, kx, kh = jax.random.split(key, 3)
    params = init_params(kp, D, E, A)
    ingr_outputs = jax.random.normal(kx, (S, B, E), jnp.float32)
    decoder_hidden = jax.random.normal(kh, (T, B, D), jnp.float32)

    fwd_bf16 = jax.jit(ingr_to_instr_attention)                     # default: bf16 operands
    fwd_f32 = jax.jit(functools.partial(ingr_to_instr_attention,
                                        compute_dtype=jnp.float32))

    # bf16 MXU path (default), checked against a matched-precision reference
    out_bf16 = jax.block_until_ready(fwd_bf16(ingr_outputs, decoder_hidden, params))
    ref_bf16 = _reference(ingr_outputs, decoder_hidden, params, jnp.bfloat16)
    assert out_bf16.shape == (T, B, A)
    assert jnp.allclose(out_bf16, ref_bf16, atol=3e-2, rtol=3e-2), \
        float(jnp.max(jnp.abs(out_bf16 - ref_bf16)))

    # f32 path (tolerance covers the approx=True softmax reciprocal)
    out_f32 = jax.block_until_ready(fwd_f32(ingr_outputs, decoder_hidden, params))
    ref_f32 = _reference(ingr_outputs, decoder_hidden, params, jnp.float32)
    assert out_f32.shape == (T, B, A)
    assert jnp.allclose(out_f32, ref_f32, atol=1e-2, rtol=1e-2), \
        float(jnp.max(jnp.abs(out_f32 - ref_f32)))

    print("KERNEL_OK")
</pallas_src>

<mosaic_0001>
module attributes {stable_mosaic.version = 11 : i64} {
  func.func @_attn_kernel(%arg0: i32, %arg1: memref<1x8x32xbf16, #tpu.memory_space<vmem>>, %arg2: memref<16x32xbf16, #tpu.memory_space<vmem>>, %arg3: memref<32x32xbf16, #tpu.memory_space<vmem>>, %arg4: memref<1x32xf32, #tpu.memory_space<vmem>>, %arg5: memref<32x128xbf16, #tpu.memory_space<vmem>>, %arg6: memref<32x128xbf16, #tpu.memory_space<vmem>>, %arg7: memref<1x128xf32, #tpu.memory_space<vmem>>, %arg8: memref<16x128xf32, #tpu.memory_space<vmem>>) attributes {dimension_semantics = [#tpu.dimension_semantics<parallel>], iteration_bounds = array<i64: 2>, scalar_prefetch = 0 : i64, scratch_operands = 0 : i64, tpu.core_type = #tpu.core_type<tc>, window_params = [{transform_indices = @transform_0, window_bounds = array<i64: 1, 8, 32>}, {transform_indices = @transform_1, window_bounds = array<i64: 16, 32>}, {pipeline_mode = #tpu.pipeline_mode<synchronous>, transform_indices = @transform_2, window_bounds = array<i64: 32, 32>}, {pipeline_mode = #tpu.pipeline_mode<synchronous>, transform_indices = @transform_3, window_bounds = array<i64: 1, 32>}, {pipeline_mode = #tpu.pipeline_mode<synchronous>, transform_indices = @transform_4, window_bounds = array<i64: 32, 128>}, {pipeline_mode = #tpu.pipeline_mode<synchronous>, transform_indices = @transform_5, window_bounds = array<i64: 32, 128>}, {pipeline_mode = #tpu.pipeline_mode<synchronous>, transform_indices = @transform_6, window_bounds = array<i64: 1, 128>}, {transform_indices = @transform_7, window_bounds = array<i64: 16, 128>}]} {
    %c0 = arith.constant 0 : index
    %c0_0 = arith.constant 0 : index
    %c0_1 = arith.constant 0 : index
    %0 = vector.load %arg1[%c0, %c0_0, %c0_1] : memref<1x8x32xbf16, #tpu.memory_space<vmem>>, vector<1x8x32xbf16>
    %c0_2 = arith.constant 0 : index
    %c0_3 = arith.constant 0 : index
    %1 = vector.load %arg2[%c0_2, %c0_3] : memref<16x32xbf16, #tpu.memory_space<vmem>>, vector<16x32xbf16>
    %c0_4 = arith.constant 0 : index
    %c0_5 = arith.constant 0 : index
    %2 = vector.load %arg3[%c0_4, %c0_5] : memref<32x32xbf16, #tpu.memory_space<vmem>>, vector<32x32xbf16>
    %cst = arith.constant dense<0.000000e+00> : vector<16x32xf32>
    %3 = tpu.matmul %1, %2, %cst {dimension_numbers = #tpu.dot_dimension_numbers<[1], [0], [0], [1], [0, 0, 1, 1], [], []>} : vector<16x32xbf16>, vector<32x32xbf16>, vector<16x32xf32> -> vector<16x32xf32>
    %c0_6 = arith.constant 0 : index
    %c0_7 = arith.constant 0 : index
    %4 = vector.load %arg4[%c0_6, %c0_7] : memref<1x32xf32, #tpu.memory_space<vmem>>, vector<1x32xf32>
    %5 = vector.broadcast %4 : vector<1x32xf32> to vector<16x32xf32>
    %6 = arith.addf %3, %5 : vector<16x32xf32>
    %7 = vector.shape_cast %6 : vector<16x32xf32> to vector<1x16x32xf32>
    %8 = arith.truncf %7 : vector<1x16x32xf32> to vector<1x16x32xbf16>
    %cst_8 = arith.constant dense<0.000000e+00> : vector<1x16x8xf32>
    %9 = tpu.matmul %8, %0, %cst_8 {dimension_numbers = #tpu.dot_dimension_numbers<[2], [2], [1], [1], [0, 0, 0, 1, 1, 1], [0], [0]>} : vector<1x16x32xbf16>, vector<1x8x32xbf16>, vector<1x16x8xf32> -> vector<1x16x8xf32>
    %cst_9 = arith.constant dense<0xFF800000> : vector<1x16xf32>
    %10 = vector.multi_reduction <maximumf>, %9, %cst_9 [2] : vector<1x16x8xf32> to vector<1x16xf32>
    %11 = vector.shape_cast %10 : vector<1x16xf32> to vector<1x16x1xf32>
    %12 = vector.broadcast %11 : vector<1x16x1xf32> to vector<1x16x8xf32>
    %13 = arith.subf %9, %12 : vector<1x16x8xf32>
    %14 = math.exp %13 : vector<1x16x8xf32>
    %cst_10 = arith.constant dense<0.000000e+00> : vector<1x16xf32>
    %15 = vector.multi_reduction <add>, %14, %cst_10 [2] : vector<1x16x8xf32> to vector<1x16xf32>
    %16 = vector.shape_cast %15 : vector<1x16xf32> to vector<1x16x1xf32>
    %17 = tpu.reciprocal %16 {approx = true} : vector<1x16x1xf32> -> vector<1x16x1xf32>
    %18 = vector.broadcast %17 : vector<1x16x1xf32> to vector<1x16x8xf32>
    %19 = arith.mulf %14, %18 : vector<1x16x8xf32>
    %20 = arith.truncf %19 : vector<1x16x8xf32> to vector<1x16x8xbf16>
    %cst_11 = arith.constant dense<0.000000e+00> : vector<1x16x32xf32>
    %21 = tpu.matmul %20, %0, %cst_11 {dimension_numbers = #tpu.dot_dimension_numbers<[2], [1], [1], [2], [0, 0, 0, 1, 1, 2], [0], [0]>} : vector<1x16x8xbf16>, vector<1x8x32xbf16>, vector<1x16x32xf32> -> vector<1x16x32xf32>
    %22 = vector.shape_cast %21 : vector<1x16x32xf32> to vector<16x32xf32>
    %23 = arith.truncf %22 : vector<16x32xf32> to vector<16x32xbf16>
    %c0_12 = arith.constant 0 : index
    %c0_13 = arith.constant 0 : index
    %24 = vector.load %arg5[%c0_12, %c0_13] : memref<32x128xbf16, #tpu.memory_space<vmem>>, vector<32x128xbf16>
    %cst_14 = arith.constant dense<0.000000e+00> : vector<16x128xf32>
    %25 = tpu.matmul %23, %24, %cst_14 {dimension_numbers = #tpu.dot_dimension_numbers<[1], [0], [0], [1], [0, 0, 1, 1], [], []>} : vector<16x32xbf16>, vector<32x128xbf16>, vector<16x128xf32> -> vector<16x128xf32>
    %c0_15 = arith.constant 0 : index
    %c0_16 = arith.constant 0 : index
    %26 = vector.load %arg6[%c0_15, %c0_16] : memref<32x128xbf16, #tpu.memory_space<vmem>>, vector<32x128xbf16>
    %cst_17 = arith.constant dense<0.000000e+00> : vector<16x128xf32>
    %27 = tpu.matmul %1, %26, %cst_17 {dimension_numbers = #tpu.dot_dimension_numbers<[1], [0], [0], [1], [0, 0, 1, 1], [], []>} : vector<16x32xbf16>, vector<32x128xbf16>, vector<16x128xf32> -> vector<16x128xf32>
    %28 = arith.addf %25, %27 : vector<16x128xf32>
    %c0_18 = arith.constant 0 : index
    %c0_19 = arith.constant 0 : index
    %29 = vector.load %arg7[%c0_18, %c0_19] : memref<1x128xf32, #tpu.memory_space<vmem>>, vector<1x128xf32>
    %30 = vector.broadcast %29 : vector<1x128xf32> to vector<16x128xf32>
    %31 = arith.addf %28, %30 : vector<16x128xf32>
    %c0_20 = arith.constant 0 : index
    %c0_21 = arith.constant 0 : index
    %32 = vector.load %arg8[%c0_20, %c0_21] : memref<16x128xf32, #tpu.memory_space<vmem>>, vector<16x128xf32>
    tpu.vector_store %arg8[%c0_20, %c0_21], %31 {strides = array<i32>} : memref<16x128xf32, #tpu.memory_space<vmem>>, vector<16x128xf32>,
    return
  }
  func.func @transform_0(%arg0: i32) -> (i32, i32, i32) {
    %c0_i32 = arith.constant 0 : i32
    %c0_i32_0 = arith.constant 0 : i32
    %c0_i32_1 = arith.constant 0 : i32
    return %arg0, %c0_i32, %c0_i32_0 : i32, i32, i32
  }
  func.func @transform_1(%arg0: i32) -> (i32, i32) {
    %c0_i32 = arith.constant 0 : i32
    %c0_i32_0 = arith.constant 0 : i32
    return %arg0, %c0_i32 : i32, i32
  }
  func.func @transform_2(%arg0: i32) -> (i32, i32) {
    %c0_i32 = arith.constant 0 : i32
    %c0_i32_0 = arith.constant 0 : i32
    %c0_i32_1 = arith.constant 0 : i32
    return %c0_i32, %c0_i32_0 : i32, i32
  }
  func.func @transform_3(%arg0: i32) -> (i32, i32) {
    %c0_i32 = arith.constant 0 : i32
    %c0_i32_0 = arith.constant 0 : i32
    %c0_i32_1 = arith.constant 0 : i32
    return %c0_i32, %c0_i32_0 : i32, i32
  }
  func.func @transform_4(%arg0: i32) -> (i32, i32) {
    %c0_i32 = arith.constant 0 : i32
    %c0_i32_0 = arith.constant 0 : i32
    %c0_i32_1 = arith.constant 0 : i32
    return %c0_i32, %c0_i32_0 : i32, i32
  }
  func.func @transform_5(%arg0: i32) -> (i32, i32) {
    %c0_i32 = arith.constant 0 : i32
    %c0_i32_0 = arith.constant 0 : i32
    %c0_i32_1 = arith.constant 0 : i32
    return %c0_i32, %c0_i32_0 : i32, i32
  }
  func.func @transform_6(%arg0: i32) -> (i32, i32) {
    %c0_i32 = arith.constant 0 : i32
    %c0_i32_0 = arith.constant 0 : i32
    %c0_i32_1 = arith.constant 0 : i32
    return %c0_i32, %c0_i32_0 : i32, i32
  }
  func.func @transform_7(%arg0: i32) -> (i32, i32) {
    %c0_i32 = arith.constant 0 : i32
    %c0_i32_0 = arith.constant 0 : i32
    return %arg0, %c0_i32 : i32, i32
  }
}

</mosaic_0001>

<llo_original>
// kernel: ingr_to_instr_attention.1
$region0: #{ingr_to_instr_attention.1}
  #allocation0 [shape = 'u32[]', space=smem, size = 0x4, offset = 0x4, fixed_abs, tag = 'smem constant byte address 0x4 - core index']
  #allocation1 [shape = 'u32[144,128]{1,0:T(1,128)}', space=vmem, size = 0x12000, scoped, tag = 'internal scratch']
  %s0 = inlined_call_operand.hbm [shape: bf16[2,8,32], index: 0, kind: input, shape index: {}]
  %s1 = inlined_call_operand.hbm [shape: bf16[32,32], index: 1, kind: input, shape index: {}]
  %s2 = inlined_call_operand.hbm [shape: bf16[32,32], index: 2, kind: input, shape index: {}]
  %s3 = inlined_call_operand.hbm [shape: f32[1,32], index: 3, kind: input, shape index: {}]
  %s4 = inlined_call_operand.hbm [shape: bf16[32,128], index: 4, kind: input, shape index: {}]
  %s5 = inlined_call_operand.hbm [shape: bf16[32,128], index: 5, kind: input, shape index: {}]
  %s6 = inlined_call_operand.hbm [shape: f32[1,128], index: 6, kind: input, shape index: {}]
  %s7 = inlined_call_operand.hbm [shape: f32[32,128], index: 7, kind: output, shape index: {}]
  %s8 = sld [smem:[#allocation0]]
  $region89: #{ingr_to_instr_attention.1} parent=0
    _
  %s10 = ssub.s32 1, %s8
  %s11 = scalar_select 0, %s10, %s8
  $region1: #{ingr_to_instr_attention.1} parent=0
    #allocation2 [shape = 'u8[4096]{0}', space=vmem, size = 0x1000, scoped, tag = 'input window, operand 0']
    #allocation3 [shape = 's32[2]{0}', space=sflag, size = 0x8, scoped, tag = 'scoped memory for ingr_to_instr_attention.1']
    #allocation4 [shape = 's32[2]{0}', space=sflag, size = 0x8, scoped, tag = 'scoped memory for ingr_to_instr_attention.1']
    #allocation5 [shape = 'u8[8192]{0}', space=vmem, size = 0x2000, scoped, tag = 'input window, operand 1']
    #allocation6 [shape = 's32[2]{0}', space=sflag, size = 0x8, scoped, tag = 'scoped memory for ingr_to_instr_attention.1']
    #allocation7 [shape = 'u8[8192]{0}', space=vmem, size = 0x2000, scoped, tag = 'input window, operand 2, single buffered']
    #allocation8 [shape = 'u8[512]{0}', space=vmem, size = 0x400, scoped, tag = 'input window, operand 3, single buffered']
    #allocation9 [shape = 's32[1]{0}', space=sflag, size = 0x4, scoped, tag = 'scoped memory for ingr_to_instr_attention.1']
    #allocation10 [shape = 'u8[8192]{0}', space=vmem, size = 0x2000, scoped, tag = 'input window, operand 4, single buffered']
    #allocation11 [shape = 'u8[8192]{0}', space=vmem, size = 0x2000, scoped, tag = 'input window, operand 5, single buffered']
    #allocation12 [shape = 's32[1]{0}', space=sflag, size = 0x4, scoped, tag = 'scoped memory for ingr_to_instr_attention.1']
    #allocation13 [shape = 'u8[512]{0}', space=vmem, size = 0x400, scoped, tag = 'input window, operand 6, single buffered']
    #allocation14 [shape = 'u8[16384]{0}', space=vmem, size = 0x4000, scoped, tag = 'output window, operand 0']
    %12 = vsyncpa [#allocation3], 0
    %s13 = scalar_lea.sflag [#allocation3], 1
    %14 = vsyncpa %s13, 0
    %15 = vsyncpa [#allocation6], 0
    %s16 = scalar_lea.sflag [#allocation6], 1
    %17 = vsyncpa %s16, 0
    %18 = vsyncpa [#allocation9], 0
    %19 = vsyncpa [#allocation12], 0
    %20 = vsyncpa [#allocation4], 0
    %s21 = scalar_lea.sflag [#allocation4], 1
    %22 = vsyncpa %s21, 0
    loop: start=0, step=1, limit=4
    $region2: #{ingr_to_instr_attention.1} parent=1 // loop_pre_header
      _
    $region3: #{ingr_to_instr_attention.1} parent=1 // loop_header
      %s24 = sphi 0, %s28
      %p25 = scmp.ge.s32.totalorder %s24, 4
      %s34 = sphi 0, %s36
      %s37 = sphi 0, %s34
      %s38 = sphi 0, %s37
      %s54 = sphi 0, %s38
      %s60 = sphi 0, %s62
      %s63 = sphi 0, %s60
      %s64 = sphi 0, %s63
      %s80 = sphi 0, %s64
      %s84 = sphi 0, %s84
      %s86 = sphi 0, %s84
      %s87 = sphi 0, %s86
      %s101 = sphi 0, %s87
      %s105 = sphi 0, %s105
      %s107 = sphi 0, %s105
      %s108 = sphi 0, %s107
      %s122 = sphi 0, %s108
      %s126 = sphi 0, %s126
      %s128 = sphi 0, %s126
      %s129 = sphi 0, %s128
      %s143 = sphi 0, %s129
      %s147 = sphi 0, %s147
      %s149 = sphi 0, %s147
      %s150 = sphi 0, %s149
      %s164 = sphi 0, %s150
      %s168 = sphi 0, %s168
      %s170 = sphi 0, %s168
      %s171 = sphi 0, %s170
      %s185 = sphi 0, %s171
      %s191 = sphi 0, %s193
      %s194 = sphi 0, %s191
      %s195 = sphi 0, %s194
      %s211 = sphi 0, %s195
    $region4: #{ingr_to_instr_attention.1} parent=1 // loop_header_branch
      %27 = sbr.rel (%p25) target = $region8
    $region5: #{ingr_to_instr_attention.1} parent=1 // loop_body
      %s29 = ssub.s32 %s24, 1
      %s30 = ssub.s32 %s24, 2
      %s31 = sadd.s32 %s24, 1
      %s32 = ssub.s32 %s24, %s31
      %p33 = scmp.eq.s32.totalorder %s32, 0
      %s35 = sadd.s32 %s34, 1
      %s36 = scalar_select %p33, %s34, %s35
      %p39 = pneg %p33
      %p40 = scmp.eq.s32.totalorder %s24, 1
      %p41 = por %p39, %p40
      %p42 = scmp.ne.s32.totalorder %s34, %s37
      %p43 = scmp.eq.s32.totalorder %s24, 0
      %p44 = por %p42, %p43
      %p45 = scmp.ne.s32.totalorder %s34, %s37
      %p46 = scmp.eq.s32.totalorder %s29, 1
      %p47 = por %p45, %p46
      %p48 = scmp.ne.s32.totalorder %s37, %s38
      %p49 = scmp.eq.s32.totalorder %s29, 0
      %p50 = por %p48, %p49
      %p51 = scmp.ne.s32.totalorder %s37, %s38
      %p52 = scmp.eq.s32.totalorder %s30, 1
      %p53 = por %p51, %p52
      %p55 = scmp.ne.s32.totalorder %s38, %s54
      %p56 = scmp.eq.s32.totalorder %s30, 0
      %p57 = por %p55, %p56
      %s58 = ssub.s32 %s24, %s31
      %p59 = scmp.eq.s32.totalorder %s58, 0
      %s61 = sadd.s32 %s60, 1
      %s62 = scalar_select %p59, %s60, %s61
      %p65 = pneg %p59
      %p66 = scmp.eq.s32.totalorder %s24, 1
      %p67 = por %p65, %p66
      %p68 = scmp.ne.s32.totalorder %s60, %s63
      %p69 = scmp.eq.s32.totalorder %s24, 0
      %p70 = por %p68, %p69
      %p71 = scmp.ne.s32.totalorder %s60, %s63
      %p72 = scmp.eq.s32.totalorder %s29, 1
      %p73 = por %p71, %p72
      %p74 = scmp.ne.s32.totalorder %s63, %s64
      %p75 = scmp.eq.s32.totalorder %s29, 0
      %p76 = por %p74, %p75
      %p77 = scmp.ne.s32.totalorder %s63, %s64
      %p78 = scmp.eq.s32.totalorder %s30, 1
      %p79 = por %p77, %p78
      %p81 = scmp.ne.s32.totalorder %s64, %s80
      %p82 = scmp.eq.s32.totalorder %s30, 0
      %p83 = por %p81, %p82
      %s85 = sadd.s32 %s84, 1
      %p88 = scmp.eq.s32.totalorder %s24, 1
      %p89 = scmp.ne.s32.totalorder %s84, %s86
      %p90 = scmp.eq.s32.totalorder %s24, 0
      %p91 = por %p89, %p90
      %p92 = scmp.ne.s32.totalorder %s84, %s86
      %p93 = scmp.eq.s32.totalorder %s29, 1
      %p94 = por %p92, %p93
      %p95 = scmp.ne.s32.totalorder %s86, %s87
      %p96 = scmp.eq.s32.totalorder %s29, 0
      %p97 = por %p95, %p96
      %p98 = scmp.ne.s32.totalorder %s86, %s87
      %p99 = scmp.eq.s32.totalorder %s30, 1
      %p100 = por %p98, %p99
      %p102 = scmp.ne.s32.totalorder %s87, %s101
      %p103 = scmp.eq.s32.totalorder %s30, 0
      %p104 = por %p102, %p103
      %s106 = sadd.s32 %s105, 1
      %p109 = scmp.eq.s32.totalorder %s24, 1
      %p110 = scmp.ne.s32.totalorder %s105, %s107
      %p111 = scmp.eq.s32.totalorder %s24, 0
      %p112 = por %p110, %p111
      %p113 = scmp.ne.s32.totalorder %s105, %s107
      %p114 = scmp.eq.s32.totalorder %s29, 1
      %p115 = por %p113, %p114
      %p116 = scmp.ne.s32.totalorder %s107, %s108
      %p117 = scmp.eq.s32.totalorder %s29, 0
      %p118 = por %p116, %p117
      %p119 = scmp.ne.s32.totalorder %s107, %s108
      %p120 = scmp.eq.s32.totalorder %s30, 1
      %p121 = por %p119, %p120
      %p123 = scmp.ne.s32.totalorder %s108, %s122
      %p124 = scmp.eq.s32.totalorder %s30, 0
      %p125 = por %p123, %p124
      %s127 = sadd.s32 %s126, 1
      %p130 = scmp.eq.s32.totalorder %s24, 1
      %p131 = scmp.ne.s32.totalorder %s126, %s128
      %p132 = scmp.eq.s32.totalorder %s24, 0
      %p133 = por %p131, %p132
      %p134 = scmp.ne.s32.totalorder %s126, %s128
      %p135 = scmp.eq.s32.totalorder %s29, 1
      %p136 = por %p134, %p135
      %p137 = scmp.ne.s32.totalorder %s128, %s129
      %p138 = scmp.eq.s32.totalorder %s29, 0
      %p139 = por %p137, %p138
      %p140 = scmp.ne.s32.totalorder %s128, %s129
      %p141 = scmp.eq.s32.totalorder %s30, 1
      %p142 = por %p140, %p141
      %p144 = scmp.ne.s32.totalorder %s129, %s143
      %p145 = scmp.eq.s32.totalorder %s30, 0
      %p146 = por %p144, %p145
      %s148 = sadd.s32 %s147, 1
      %p151 = scmp.eq.s32.totalorder %s24, 1
      %p152 = scmp.ne.s32.totalorder %s147, %s149
      %p153 = scmp.eq.s32.totalorder %s24, 0
      %p154 = por %p152, %p153
      %p155 = scmp.ne.s32.totalorder %s147, %s149
      %p156 = scmp.eq.s32.totalorder %s29, 1
      %p157 = por %p155, %p156
      %p158 = scmp.ne.s32.totalorder %s149, %s150
      %p159 = scmp.eq.s32.totalorder %s29, 0
      %p160 = por %p158, %p159
      %p161 = scmp.ne.s32.totalorder %s149, %s150
      %p162 = scmp.eq.s32.totalorder %s30, 1
      %p163 = por %p161, %p162
      %p165 = scmp.ne.s32.totalorder %s150, %s164
      %p166 = scmp.eq.s32.totalorder %s30, 0
      %p167 = por %p165, %p166
      %s169 = sadd.s32 %s168, 1
      %p172 = scmp.eq.s32.totalorder %s24, 1
      %p173 = scmp.ne.s32.totalorder %s168, %s170
      %p174 = scmp.eq.s32.totalorder %s24, 0
      %p175 = por %p173, %p174
      %p176 = scmp.ne.s32.totalorder %s168, %s170
      %p177 = scmp.eq.s32.totalorder %s29, 1
      %p178 = por %p176, %p177
      %p179 = scmp.ne.s32.totalorder %s170, %s171
      %p180 = scmp.eq.s32.totalorder %s29, 0
      %p181 = por %p179, %p180
      %p182 = scmp.ne.s32.totalorder %s170, %s171
      %p183 = scmp.eq.s32.totalorder %s30, 1
      %p184 = por %p182, %p183
      %p186 = scmp.ne.s32.totalorder %s171, %s185
      %p187 = scmp.eq.s32.totalorder %s30, 0
      %p188 = por %p186, %p187
      %s189 = ssub.s32 %s24, %s31
      %p190 = scmp.eq.s32.totalorder %s189, 0
      %s192 = sadd.s32 %s191, 1
      %s193 = scalar_select %p190, %s191, %s192
      %p196 = pneg %p190
      %p197 = scmp.eq.s32.totalorder %s24, 1
      %p198 = por %p196, %p197
      %p199 = scmp.ne.s32.totalorder %s191, %s194
      %p200 = scmp.eq.s32.totalorder %s24, 0
      %p201 = por %p199, %p200
      %p202 = scmp.ne.s32.totalorder %s191, %s194
      %p203 = scmp.eq.s32.totalorder %s29, 1
      %p204 = por %p202, %p203
      %p205 = scmp.ne.s32.totalorder %s194, %s195
      %p206 = scmp.eq.s32.totalorder %s29, 0
      %p207 = por %p205, %p206
      %p208 = scmp.ne.s32.totalorder %s194, %s195
      %p209 = scmp.eq.s32.totalorder %s30, 1
      %p210 = por %p208, %p209
      %p212 = scmp.ne.s32.totalorder %s195, %s211
      %p213 = scmp.eq.s32.totalorder %s30, 0
      %p214 = por %p212, %p213
      %p215 = scmp.le.s32.totalorder 1, %s24
      %p216 = scmp.lt.s32.totalorder %s24, 3
      %p217 = pnand %p215, %p216
      %p218 = pneg %p217
      // Predicated region
      $region9: #{ingr_to_instr_attention.1} parent=5 // pred_check
        _
      $region10: #{ingr_to_instr_attention.1} parent=5 // pred_check_branch
        %220 = sbr.rel (%p217) target = $region12
      $region11: #{ingr_to_instr_attention.1} parent=5 // pred_region
        %s221 = ssub.s32 %s24, 1
        // Predicated region
        $region13: #{ingr_to_instr_attention.1} parent=11 // pred_check
          %p222 = pneg %p97
        $region14: #{ingr_to_instr_attention.1} parent=11 // pred_check_branch
          %224 = sbr.rel (%p222) target = $region16
        $region15: #{ingr_to_instr_attention.1} parent=11 // pred_region
          %s226 = ssub.s32 256, 256
          %227 = vsyncadd [#allocation6], %s226
          %s228 = sshll.u32 [#allocation7], 4
          %s229 = int_to_ptr.vmem [resolvable:$true] %s228
          %234 = dma.hbm_to_vmem [thread:$0]  %s2, 256, %s229, [#allocation6], 64, 64, 4
        $region16: #{ingr_to_instr_attention.1} parent=11 // pred_fallthru
          _
        // Predicated region
        $region17: #{ingr_to_instr_attention.1} parent=11 // pred_check
          %p235 = pneg %p118
        $region18: #{ingr_to_instr_attention.1} parent=11 // pred_check_branch
          %237 = sbr.rel (%p235) target = $region20
        $region19: #{ingr_to_instr_attention.1} parent=11 // pred_region
          %s239 = ssub.s32 16, 16
          %240 = vsyncadd [#allocation9], %s239
          %s242 = sshll.u32 [#allocation8], 4
          %s243 = int_to_ptr.vmem [resolvable:$true] %s242
          %245 = dma.hbm_to_vmem [thread:$0]  %s3, 16, %s243, [#allocation9]
        $region20: #{ingr_to_instr_attention.1} parent=11 // pred_fallthru
          _
        // Predicated region
        $region21: #{ingr_to_instr_attention.1} parent=11 // pred_check
          %p246 = pneg %p139
        $region22: #{ingr_to_instr_attention.1} parent=11 // pred_check_branch
          %248 = sbr.rel (%p246) target = $region24
        $region23: #{ingr_to_instr_attention.1} parent=11 // pred_region
          %s250 = ssub.s32 256, 256
          %251 = vsyncadd [#allocation9], %s250
          %s252 = sshll.u32 [#allocation10], 4
          %s253 = int_to_ptr.vmem [resolvable:$true] %s252
          %258 = dma.hbm_to_vmem [thread:$0]  %s4, 256, %s253, [#allocation9], 64, 64, 4
        $region24: #{ingr_to_instr_attention.1} parent=11 // pred_fallthru
          _
        // Predicated region
        $region25: #{ingr_to_instr_attention.1} parent=11 // pred_check
          %p259 = pneg %p160
        $region26: #{ingr_to_instr_attention.1} parent=11 // pred_check_branch
          %261 = sbr.rel (%p259) target = $region28
        $region27: #{ingr_to_instr_attention.1} parent=11 // pred_region
          %s263 = ssub.s32 256, 256
          %264 = vsyncadd [#allocation12], %s263
          %s265 = sshll.u32 [#allocation11], 4
          %s266 = int_to_ptr.vmem [resolvable:$true] %s265
          %271 = dma.hbm_to_vmem [thread:$0]  %s5, 256, %s266, [#allocation12], 64, 64, 4
        $region28: #{ingr_to_instr_attention.1} parent=11 // pred_fallthru
          _
        // Predicated region
        $region29: #{ingr_to_instr_attention.1} parent=11 // pred_check
          %p272 = pneg %p181
        $region30: #{ingr_to_instr_attention.1} parent=11 // pred_check_branch
          %274 = sbr.rel (%p272) target = $region32
        $region31: #{ingr_to_instr_attention.1} parent=11 // pred_region
          %s276 = ssub.s32 16, 16
          %277 = vsyncadd [#allocation12], %s276
          %s279 = sshll.u32 [#allocation13], 4
          %s280 = int_to_ptr.vmem [resolvable:$true] %s279
          %282 = dma.hbm_to_vmem [thread:$0]  %s6, 16, %s280, [#allocation12]
        $region32: #{ingr_to_instr_attention.1} parent=11 // pred_fallthru
          _
      $region12: #{ingr_to_instr_attention.1} parent=5 // pred_fallthru
        _
      %p283 = scmp.lt.s32.totalorder %s24, 2
      // Predicated region
      $region33: #{ingr_to_instr_attention.1} parent=5 // pred_check
        %p284 = pneg %p283
      $region34: #{ingr_to_instr_attention.1} parent=5 // pred_check_branch
        %286 = sbr.rel (%p284) target = $region36
      $region35: #{ingr_to_instr_attention.1} parent=5 // pred_region
        // Predicated region
        $region37: #{ingr_to_instr_attention.1} parent=35 // pred_check
          %p287 = pneg %p44
        $region38: #{ingr_to_instr_attention.1} parent=35 // pred_check_branch
          %289 = sbr.rel (%p287) target = $region40
        $region39: #{ingr_to_instr_attention.1} parent=35 // pred_region
          %s290 = sand.u32 %s34, 1
          %s291 = scalar_lea.sflag [#allocation3], %s290
          %s292 = sand.u32 %s34, 1
          %s293 = smul.addr %s292, 4
          %s294 = scalar_lea.vmem [#allocation2], %s293
          %s296 = ssub.s32 64, 64
          %297 = vsyncadd %s291, %s296
          %s298 = smul.addr %s24, 64
          %s299 = scalar_lea.hbm %s0, %s298
          %s301 = sshll.u32 %s294, 4
          %s302 = int_to_ptr.vmem [resolvable:$true] %s301
          %304 = dma.hbm_to_vmem [thread:$0]  %s299, 64, %s302, %s291
        $region40: #{ingr_to_instr_attention.1} parent=35 // pred_fallthru
          _
        // Predicated region
        $region41: #{ingr_to_instr_attention.1} parent=35 // pred_check
          %p305 = pneg %p70
        $region42: #{ingr_to_instr_attention.1} parent=35 // pred_check_branch
          %307 = sbr.rel (%p305) target = $region44
        $region43: #{ingr_to_instr_attention.1} parent=35 // pred_region
          %s308 = sand.u32 %s24, 1
          %s309 = scalar_lea.sflag [#allocation6], %s308
          %s310 = sand.u32 %s60, 1
          %s311 = smul.addr %s310, 8
          %s312 = scalar_lea.vmem [#allocation5], %s311
          %s313 = smul.u32 2, %s24
          %s315 = ssub.s32 128, 128
          %316 = vsyncadd %s309, %s315
          %s317 = smul.addr %s313, 64
          %s318 = scalar_lea.hbm %s1, %s317
          %s319 = sshll.u32 %s312, 4
          %s320 = int_to_ptr.vmem [resolvable:$true] %s319
          %325 = dma.hbm_to_vmem [thread:$0]  %s318, 128, %s320, %s309, 64, 64, 4
        $region44: #{ingr_to_instr_attention.1} parent=35 // pred_fallthru
          _
      $region36: #{ingr_to_instr_attention.1} parent=5 // pred_fallthru
        _
      %p326 = scmp.le.s32.totalorder 1, %s24
      %p327 = scmp.lt.s32.totalorder %s24, 3
      %p328 = pnand %p326, %p327
      %p329 = pneg %p328
      // Predicated region
      $region45: #{ingr_to_instr_attention.1} parent=5 // pred_check
        _
      $region46: #{ingr_to_instr_attention.1} parent=5 // pred_check_branch
        %331 = sbr.rel (%p328) target = $region48
      $region47: #{ingr_to_instr_attention.1} parent=5 // pred_region
        %s332 = ssub.s32 %s24, 1
        %s333 = sand.u32 %s37, 1
        %s334 = scalar_lea.sflag [#allocation3], %s333
        %s335 = sand.u32 %s37, 1
        %s336 = smul.addr %s335, 4
        %s337 = scalar_lea.vmem [#allocation2], %s336
        // Predicated region
        $region49: #{ingr_to_instr_attention.1} parent=47 // pred_check
          %p338 = pneg %p50
        $region50: #{ingr_to_instr_attention.1} parent=47 // pred_check_branch
          %340 = sbr.rel (%p338) target = $region52
        $region51: #{ingr_to_instr_attention.1} parent=47 // pred_region
          %341 = dma.done %s334, 64
        $region52: #{ingr_to_instr_attention.1} parent=47 // pred_fallthru
          _
        %s342 = sand.u32 %s29, 1
        %s343 = scalar_lea.sflag [#allocation6], %s342
        %s344 = sand.u32 %s63, 1
        %s345 = smul.addr %s344, 8
        %s346 = scalar_lea.vmem [#allocation5], %s345
        // Predicated region
        $region53: #{ingr_to_instr_attention.1} parent=47 // pred_check
          %p347 = pneg %p76
        $region54: #{ingr_to_instr_attention.1} parent=47 // pred_check_branch
          %349 = sbr.rel (%p347) target = $region56
        $region55: #{ingr_to_instr_attention.1} parent=47 // pred_region
          %350 = dma.done %s343, 128
        $region56: #{ingr_to_instr_attention.1} parent=47 // pred_fallthru
          _
        // Predicated region
        $region57: #{ingr_to_instr_attention.1} parent=47 // pred_check
          %p351 = pneg %p97
        $region58: #{ingr_to_instr_attention.1} parent=47 // pred_check_branch
          %353 = sbr.rel (%p351) target = $region60
        $region59: #{ingr_to_instr_attention.1} parent=47 // pred_region
          %354 = dma.done [#allocation6], 256
        $region60: #{ingr_to_instr_attention.1} parent=47 // pred_fallthru
          _
        // Predicated region
        $region61: #{ingr_to_instr_attention.1} parent=47 // pred_check
          %p355 = pneg %p118
        $region62: #{ingr_to_instr_attention.1} parent=47 // pred_check_branch
          %357 = sbr.rel (%p355) target = $region64
        $region63: #{ingr_to_instr_attention.1} parent=47 // pred_region
          %358 = dma.done [#allocation9], 16
        $region64: #{ingr_to_instr_attention.1} parent=47 // pred_fallthru
          _
        // Predicated region
        $region65: #{ingr_to_instr_attention.1} parent=47 // pred_check
          %p359 = pneg %p139
        $region66: #{ingr_to_instr_attention.1} parent=47 // pred_check_branch
          %361 = sbr.rel (%p359) target = $region68
        $region67: #{ingr_to_instr_attention.1} parent=47 // pred_region
          %362 = dma.done [#allocation9], 256
        $region68: #{ingr_to_instr_attention.1} parent=47 // pred_fallthru
          _
        // Predicated region
        $region69: #{ingr_to_instr_attention.1} parent=47 // pred_check
          %p363 = pneg %p160
        $region70: #{ingr_to_instr_attention.1} parent=47 // pred_check_branch
          %365 = sbr.rel (%p363) target = $region72
        $region71: #{ingr_to_instr_attention.1} parent=47 // pred_region
          %366 = dma.done [#allocation12], 256
        $region72: #{ingr_to_instr_attention.1} parent=47 // pred_fallthru
          _
        // Predicated region
        $region73: #{ingr_to_instr_attention.1} parent=47 // pred_check
          %p367 = pneg %p181
        $region74: #{ingr_to_instr_attention.1} parent=47 // pred_check_branch
          %369 = sbr.rel (%p367) target = $region76
        $region75: #{ingr_to_instr_attention.1} parent=47 // pred_region
          %370 = dma.done [#allocation12], 16
        $region76: #{ingr_to_instr_attention.1} parent=47 // pred_fallthru
          _
        %s371 = sand.u32 %s37, 1
        %s372 = scalar_lea.sflag [#allocation3], %s371
        %s373 = sand.u32 %s37, 1
        %s374 = smul.addr %s373, 4
        %s375 = scalar_lea.vmem [#allocation2], %s374
        %p376 = pneg %p50
        %p377 = pneg %p47
        %s378 = sand.u32 %s29, 1
        %s379 = scalar_lea.sflag [#allocation6], %s378
        %s380 = sand.u32 %s63, 1
        %s381 = smul.addr %s380, 8
        %s382 = scalar_lea.vmem [#allocation5], %s381
        %p383 = pneg %p76
        %p384 = pneg %p73
        %p385 = pneg %p97
        %p386 = pneg %p94
        %p387 = pneg %p118
        %p388 = pneg %p115
        %p389 = pneg %p139
        %p390 = pneg %p136
        %p391 = pneg %p160
        %p392 = pneg %p157
        %p393 = pneg %p181
        %p394 = pneg %p178
        %p395 = pneg %p207
        %p396 = pneg %p204
        %s397 = sand.u32 %s194, 1
        %s398 = scalar_lea.sflag [#allocation4], %s397
        %s399 = sand.u32 %s194, 1
        %s400 = smul.addr %s399, 16
        %s401 = scalar_lea.vmem [#allocation14], %s400
        %s402 = smul.u32 2, %s29
        %s403 = smul.u32 2, %s29
        %v405 = vld [vmem:[%s337] sm:$0xf]
        %v406 = vld [vmem:[%s346] sm:$0xf]
        %v407 = vld [vmem:[%s346 + $0x4] sm:$0xf]
        %v408 = vld [vmem:[#allocation7] sm:$0xf]
        %v409 = vld [vmem:[#allocation7 + $0x4] sm:$0xf]
        %v410 = vld [vmem:[#allocation7 + $0x8] sm:$0xf]
        %v411 = vld [vmem:[#allocation7 + $0xc] sm:$0xf]
        %v412 = vld [vmem:[#allocation8] sm:$0x1]
        %v414 = vlaneseq
        %v415 = vshrl.u32 %v414, 7
        %v416 = vsub.s32 0, %v415
        %v417 = vrot.slane %v412, %v416
        %v421 = vunpack.c.l.b16 %v406
        %v422 = vunpack.c.l.b16 %v407
        %v423 = vpack.c.b16 %v422, %v421
        %v428 = vunpack.c.l.b16 %v408
        %v429 = vunpack.c.l.b16 %v409
        %v430 = vunpack.c.l.b16 %v410
        %v431 = vunpack.c.l.b16 %v411
        %v432 = vpack.c.b16 %v429, %v428
        %v433 = vpack.c.b16 %v431, %v430
        %vm436 = vcmask 261120
        %v438 = vsel %vm436, %v423, 0
        %440 = vmatprep.subr.bf16.mxu0 0
        %441 = vmatpush1.bf16.msra.mxu0 %v432
        %442 = vmatprep.subr.bf16.mxu0 0
        %443 = vmatpush1.bf16.msra.mxu0 %v433
        %444 = vmatprep.subr.bf16.mxu0 0
        %445 = vmatpush1.bf16.msra.mxu0 0
        %446 = vmatprep.subr.bf16.mxu0 0
        %447 = vmatpush1.bf16.msra.mxu0 0
        %448 = vmatprep.subr.bf16.mxu0 0
        %449 = vmatpush1.bf16.msra.mxu0 0
        %450 = vmatprep.subr.bf16.mxu0 0
        %451 = vmatpush1.bf16.msra.mxu0 0
        %452 = vmatprep.subr.bf16.mxu0 0
        %453 = vmatpush1.bf16.msra.mxu0 0
        %454 = vmatprep.subr.bf16.mxu0 0
        %455 = vmatpush1.bf16.msra.mxu0 0
        %456 = vmatprep.subr.bf16.mxu0 0
        %457 = vmatpush1.bf16.msra.mxu0 0
        %458 = vmatprep.subr.bf16.mxu0 0
        %459 = vmatpush1.bf16.msra.mxu0 0
        %460 = vmatprep.subr.bf16.mxu0 0
        %461 = vmatpush1.bf16.msra.mxu0 0
        %462 = vmatprep.subr.bf16.mxu0 0
        %463 = vmatpush1.bf16.msra.mxu0 0
        %464 = vmatprep.subr.bf16.mxu0 0
        %465 = vmatpush1.bf16.msra.mxu0 0
        %466 = vmatprep.subr.bf16.mxu0 0
        %467 = vmatpush1.bf16.msra.mxu0 0
        %468 = vmatprep.subr.bf16.mxu0 0
        %469 = vmatpush1.bf16.msra.mxu0 0
        %470 = vmatprep.subr.bf16.mxu0 0
        %471 = vmatpush1.bf16.msra.mxu0 0
        %472 = vmatprep.mubr.bf16.mxu0 0
        %473 = vmatmul.mubr.bf16.gmra.mrb[0].mxu0 %v438
        %v474 = vpop.f32.mrb[0].mxu0
        %v475 = vadd.f32 %v417, %v474
        %v476 = vpop.f32.mrb[0].mxu0
        %v477 = vpop.f32.mrb[0].mxu0
        %v478 = vadd.f32 %v417, %v477
        %v479 = vpop.f32.mrb[0].mxu0
        %480 = vdwg.mxu0
        %v481 = vpack.c.bf16 %v478, %v475
        %v483 = vsel %vm436, %v481, 0
        %v486 = vsel %vm436, %v405, 0
        %488 = vmatprep.subr.bf16.mxu0 0
        %489 = vmatpush1.bf16.xpose.msra.mxu0 %v486
        %490 = vmatprep.subr.bf16.mxu0 0
        %491 = vmatpush1.bf16.xpose.msra.mxu0 0
        %492 = vmatprep.subr.bf16.mxu0 0
        %493 = vmatpush1.bf16.xpose.msra.mxu0 0
        %494 = vmatprep.subr.bf16.mxu0 0
        %495 = vmatpush1.bf16.xpose.msra.mxu0 0
        %496 = vmatprep.subr.bf16.mxu0 0
        %497 = vmatpush1.bf16.xpose.msra.mxu0 0
        %498 = vmatprep.subr.bf16.mxu0 0
        %499 = vmatpush1.bf16.xpose.msra.mxu0 0
        %500 = vmatprep.subr.bf16.mxu0 0
        %501 = vmatpush1.bf16.xpose.msra.mxu0 0
        %502 = vmatprep.subr.bf16.mxu0 0
        %503 = vmatpush1.bf16.xpose.msra.mxu0 0
        %504 = vmatprep.subr.bf16.mxu0 0
        %505 = vmatpush1.bf16.xpose.msra.mxu0 0
        %506 = vmatprep.subr.bf16.mxu0 0
        %507 = vmatpush1.bf16.xpose.msra.mxu0 0
        %508 = vmatprep.subr.bf16.mxu0 0
        %509 = vmatpush1.bf16.xpose.msra.mxu0 0
        %510 = vmatprep.subr.bf16.mxu0 0
        %511 = vmatpush1.bf16.xpose.msra.mxu0 0
        %512 = vmatprep.subr.bf16.mxu0 0
        %513 = vmatpush1.bf16.xpose.msra.mxu0 0
        %514 = vmatprep.subr.bf16.mxu0 0
        %515 = vmatpush1.bf16.xpose.msra.mxu0 0
        %516 = vmatprep.subr.bf16.mxu0 0
        %517 = vmatpush1.bf16.xpose.msra.mxu0 0
        %518 = vmatprep.subr.bf16.mxu0 0
        %519 = vmatpush1.bf16.xpose.msra.mxu0 0
        %520 = vmatprep.mubr.bf16.mxu0 0
        %521 = vmatmul.mubr.bf16.gmra.mrb[0].mxu0 %v483
        %v522 = vpop.f32.mrb[0].mxu0
        %v523 = vadd.f32 0.0, %v522
        %v524 = vpop.f32.mrb[0].mxu0
        %v525 = vpop.f32.mrb[0].mxu0
        %v526 = vadd.f32 0.0, %v525
        %v527 = vpop.f32.mrb[0].mxu0
        %528 = vdwg.mxu0
        %vm529 = vcmask 64512
        %v530 = vsel %vm529, %v523, -inf
        %531 = vmax.xlane.f32.xlu0 %v530
        %v532 = vpop.xlane.xlu0 %531
        %v533 = vsel %vm529, %v526, -inf
        %534 = vmax.xlane.f32.xlu0 %v533
        %v535 = vpop.xlane.xlu0 %534
        %v536 = vsub.f32 %v523, %v532
        %v537 = vsub.f32 %v526, %v535
        %v538 = vmul.f32 %v536, 1.442695
        %v539 = vpow.pop %v538
        %v540 = vmul.f32 %v537, 1.442695
        %v541 = vpow.pop %v540
        %v542 = vsel %vm529, %v539, 0.0
        %543 = vadd.xlane.f32.xlu0 %v542
        %v544 = vpop.xlane.xlu0 %543
        %v545 = vsel %vm529, %v541, 0.0
        %546 = vadd.xlane.f32.xlu0 %v545
        %v547 = vpop.xlane.xlu0 %546
        %v548 = vrcp.pop %v544
        %v549 = vrcp.pop %v547
        %v550 = vmul.f32 %v539, %v548
        %v551 = vmul.f32 %v541, %v549
        %v552 = vpack.c.bf16 %v551, %v550
        %v554 = vsel %vm529, %v552, 0
        %vm556 = vcmask 1043456
        %v557 = vsel %vm556, %v405, 0
        %559 = vmatprep.subr.bf16.mxu0 0
        %560 = vmatpush1.bf16.msra.mxu0 %v557
        %561 = vmatprep.subr.bf16.mxu0 0
        %562 = vmatpush1.bf16.msra.mxu0 0
        %563 = vmatprep.subr.bf16.mxu0 0
        %564 = vmatpush1.bf16.msra.mxu0 0
        %565 = vmatprep.subr.bf16.mxu0 0
        %566 = vmatpush1.bf16.msra.mxu0 0
        %567 = vmatprep.subr.bf16.mxu0 0
        %568 = vmatpush1.bf16.msra.mxu0 0
        %569 = vmatprep.subr.bf16.mxu0 0
        %570 = vmatpush1.bf16.msra.mxu0 0
        %571 = vmatprep.subr.bf16.mxu0 0
        %572 = vmatpush1.bf16.msra.mxu0 0
        %573 = vmatprep.subr.bf16.mxu0 0
        %574 = vmatpush1.bf16.msra.mxu0 0
        %575 = vmatprep.subr.bf16.mxu0 0
        %576 = vmatpush1.bf16.msra.mxu0 0
        %577 = vmatprep.subr.bf16.mxu0 0
        %578 = vmatpush1.bf16.msra.mxu0 0
        %579 = vmatprep.subr.bf16.mxu0 0
        %580 = vmatpush1.bf16.msra.mxu0 0
        %581 = vmatprep.subr.bf16.mxu0 0
        %582 = vmatpush1.bf16.msra.mxu0 0
        %583 = vmatprep.subr.bf16.mxu0 0
        %584 = vmatpush1.bf16.msra.mxu0 0
        %585 = vmatprep.subr.bf16.mxu0 0
        %586 = vmatpush1.bf16.msra.mxu0 0
        %587 = vmatprep.subr.bf16.mxu0 0
        %588 = vmatpush1.bf16.msra.mxu0 0
        %589 = vmatprep.subr.bf16.mxu0 0
        %590 = vmatpush1.bf16.msra.mxu0 0
        %591 = vmatprep.mubr.bf16.mxu0 0
        %592 = vmatmul.mubr.bf16.gmra.mrb[0].mxu0 %v554
        %v593 = vpop.f32.mrb[0].mxu0
        %v594 = vadd.f32 0.0, %v593
        %v595 = vpop.f32.mrb[0].mxu0
        %v596 = vpop.f32.mrb[0].mxu0
        %v597 = vadd.f32 0.0, %v596
        %v598 = vpop.f32.mrb[0].mxu0
        %599 = vdwg.mxu0
        %v600 = vpack.c.bf16 %v597, %v594
        %v601 = vld [vmem:[#allocation10] sm:$0xf]
        %v602 = vld [vmem:[#allocation10 + $0x4] sm:$0xf]
        %v603 = vld [vmem:[#allocation10 + $0x8] sm:$0xf]
        %v604 = vld [vmem:[#allocation10 + $0xc] sm:$0xf]
        %v605 = vld [vmem:[#allocation11] sm:$0xf]
        %v606 = vld [vmem:[#allocation11 + $0x4] sm:$0xf]
        %v607 = vld [vmem:[#allocation11 + $0x8] sm:$0xf]
        %v608 = vld [vmem:[#allocation11 + $0xc] sm:$0xf]
        %v613 = vunpack.c.l.b16 %v605
        %v614 = vunpack.c.l.b16 %v606
        %v615 = vunpack.c.l.b16 %v607
        %v616 = vunpack.c.l.b16 %v608
        %v617 = vpack.c.b16 %v614, %v613
        %v618 = vpack.c.b16 %v616, %v615
        %621 = vmatprep.subr.bf16.mxu0 0
        %622 = vmatpush1.bf16.msra.mxu0 %v617
        %623 = vmatprep.subr.bf16.mxu0 0
        %624 = vmatpush1.bf16.msra.mxu0 %v618
        %625 = vmatprep.subr.bf16.mxu0 0
        %626 = vmatpush1.bf16.msra.mxu0 0
        %627 = vmatprep.subr.bf16.mxu0 0
        %628 = vmatpush1.bf16.msra.mxu0 0
        %629 = vmatprep.subr.bf16.mxu0 0
        %630 = vmatpush1.bf16.msra.mxu0 0
        %631 = vmatprep.subr.bf16.mxu0 0
        %632 = vmatpush1.bf16.msra.mxu0 0
        %633 = vmatprep.subr.bf16.mxu0 0
        %634 = vmatpush1.bf16.msra.mxu0 0
        %635 = vmatprep.subr.bf16.mxu0 0
        %636 = vmatpush1.bf16.msra.mxu0 0
        %637 = vmatprep.subr.bf16.mxu0 0
        %638 = vmatpush1.bf16.msra.mxu0 0
        %639 = vmatprep.subr.bf16.mxu0 0
        %640 = vmatpush1.bf16.msra.mxu0 0
        %641 = vmatprep.subr.bf16.mxu0 0
        %642 = vmatpush1.bf16.msra.mxu0 0
        %643 = vmatprep.subr.bf16.mxu0 0
        %644 = vmatpush1.bf16.msra.mxu0 0
        %645 = vmatprep.subr.bf16.mxu0 0
        %646 = vmatpush1.bf16.msra.mxu0 0
        %647 = vmatprep.subr.bf16.mxu0 0
        %648 = vmatpush1.bf16.msra.mxu0 0
        %649 = vmatprep.subr.bf16.mxu0 0
        %650 = vmatpush1.bf16.msra.mxu0 0
        %651 = vmatprep.subr.bf16.mxu0 0
        %652 = vmatpush1.bf16.msra.mxu0 0
        %653 = vmatprep.mubr.bf16.mxu0 0
        %654 = vmatmul.mubr.bf16.gmra.mrb[0].mxu0 %v438
        %v655 = vpop.f32.mrb[0].mxu0
        %v656 = vadd.f32 0.0, %v655
        %v657 = vpop.f32.mrb[0].mxu0
        %v658 = vpop.f32.mrb[0].mxu0
        %v659 = vadd.f32 0.0, %v658
        %v660 = vpop.f32.mrb[0].mxu0
        %661 = vdwg.mxu0
        %v666 = vunpack.c.l.b16 %v601
        %v667 = vunpack.c.l.b16 %v602
        %v668 = vunpack.c.l.b16 %v603
        %v669 = vunpack.c.l.b16 %v604
        %v670 = vpack.c.b16 %v667, %v666
        %v671 = vpack.c.b16 %v669, %v668
        %v675 = vsel %vm436, %v600, 0
        %677 = vmatprep.subr.bf16.mxu0 0
        %678 = vmatpush1.bf16.msra.mxu0 %v670
        %679 = vmatprep.subr.bf16.mxu0 0
        %680 = vmatpush1.bf16.msra.mxu0 %v671
        %681 = vmatprep.subr.bf16.mxu0 0
        %682 = vmatpush1.bf16.msra.mxu0 0
        %683 = vmatprep.subr.bf16.mxu0 0
        %684 = vmatpush1.bf16.msra.mxu0 0
        %685 = vmatprep.subr.bf16.mxu0 0
        %686 = vmatpush1.bf16.msra.mxu0 0
        %687 = vmatprep.subr.bf16.mxu0 0
        %688 = vmatpush1.bf16.msra.mxu0 0
        %689 = vmatprep.subr.bf16.mxu0 0
        %690 = vmatpush1.bf16.msra.mxu0 0
        %691 = vmatprep.subr.bf16.mxu0 0
        %692 = vmatpush1.bf16.msra.mxu0 0
        %693 = vmatprep.subr.bf16.mxu0 0
        %694 = vmatpush1.bf16.msra.mxu0 0
        %695 = vmatprep.subr.bf16.mxu0 0
        %696 = vmatpush1.bf16.msra.mxu0 0
        %697 = vmatprep.subr.bf16.mxu0 0
        %698 = vmatpush1.bf16.msra.mxu0 0
        %699 = vmatprep.subr.bf16.mxu0 0
        %700 = vmatpush1.bf16.msra.mxu0 0
        %701 = vmatprep.subr.bf16.mxu0 0
        %702 = vmatpush1.bf16.msra.mxu0 0
        %703 = vmatprep.subr.bf16.mxu0 0
        %704 = vmatpush1.bf16.msra.mxu0 0
        %705 = vmatprep.subr.bf16.mxu0 0
        %706 = vmatpush1.bf16.msra.mxu0 0
        %707 = vmatprep.subr.bf16.mxu0 0
        %708 = vmatpush1.bf16.msra.mxu0 0
        %709 = vmatprep.mubr.bf16.mxu0 0
        %710 = vmatmul.mubr.bf16.gmra.mrb[0].mxu0 %v675
        %v711 = vpop.f32.mrb[0].mxu0
        %v712 = vadd.f32 %v656, %v711
        %v713 = vpop.f32.mrb[0].mxu0
        %v714 = vpop.f32.mrb[0].mxu0
        %v715 = vadd.f32 %v659, %v714
        %v716 = vpop.f32.mrb[0].mxu0
        %717 = vdwg.mxu0
        %v718 = vld [vmem:[#allocation13] sm:$0x1]
        %v720 = vlaneseq
        %v721 = vshrl.u32 %v720, 7
        %v722 = vsub.s32 0, %v721
        %v723 = vrot.slane %v718, %v722
        %v725 = vadd.f32 %v712, %v723
        %v726 = vadd.f32 %v715, %v723
        %727 = vst [vmem:[%s401] sm:$0xff] %v725
        %728 = vst [vmem:[%s401 + $0x8] sm:$0xff] %v726
        %s729 = sand.u32 %s194, 1
        %s730 = scalar_lea.sflag [#allocation4], %s729
        %s731 = sand.u32 %s194, 1
        %s732 = smul.addr %s731, 16
        %s733 = scalar_lea.vmem [#allocation14], %s732
        // Predicated region
        $region77: #{ingr_to_instr_attention.1} parent=47 // pred_check
          %p734 = pneg %p204
        $region78: #{ingr_to_instr_attention.1} parent=47 // pred_check_branch
          %736 = sbr.rel (%p734) target = $region80
        $region79: #{ingr_to_instr_attention.1} parent=47 // pred_region
          %s737 = smul.u32 2, %s29
          %s739 = ssub.s32 256, 256
          %740 = vsyncadd %s730, %s739
          %s741 = smul.addr %s737, 128
          %s742 = scalar_lea.hbm %s7, %s741
          %s743 = sshll.u32 %s733, 4
          %s744 = int_to_ptr.vmem [resolvable:$true] %s743
          %749 = dma.vmem_to_hbm [thread:$0]  %s744, 256, %s742, %s730, 128, 128, 8
        $region80: #{ingr_to_instr_attention.1} parent=47 // pred_fallthru
          _
      $region48: #{ingr_to_instr_attention.1} parent=5 // pred_fallthru
        _
      %p750 = scmp.le.s32.totalorder 2, %s24
      // Predicated region
      $region81: #{ingr_to_instr_attention.1} parent=5 // pred_check
        %p751 = pneg %p750
      $region82: #{ingr_to_instr_attention.1} parent=5 // pred_check_branch
        %753 = sbr.rel (%p751) target = $region84
      $region83: #{ingr_to_instr_attention.1} parent=5 // pred_region
        %s754 = ssub.s32 %s24, 2
        // Predicated region
        $region85: #{ingr_to_instr_attention.1} parent=83 // pred_check
          %p755 = pneg %p210
        $region86: #{ingr_to_instr_attention.1} parent=83 // pred_check_branch
          %757 = sbr.rel (%p755) target = $region88
        $region87: #{ingr_to_instr_attention.1} parent=83 // pred_region
          %s758 = sand.u32 %s195, 1
          %s759 = scalar_lea.sflag [#allocation4], %s758
          %s760 = sand.u32 %s195, 1
          %s761 = smul.addr %s760, 16
          %s762 = scalar_lea.vmem [#allocation14], %s761
          %763 = dma.done %s759, 256
        $region88: #{ingr_to_instr_attention.1} parent=83 // pred_fallthru
          _
      $region84: #{ingr_to_instr_attention.1} parent=5 // pred_fallthru
        _
    $region6: #{ingr_to_instr_attention.1} parent=1 // loop_footer
      %s28 = sadd.s32 1, %s24
    $region7: #{ingr_to_instr_attention.1} parent=1 // loop_footer_branch
      %23 = sbr.rel target = $region3
    $region8: #{ingr_to_instr_attention.1} parent=1 // loop_exit
      _
    %764 = vsyncpa [#allocation3], 1
    %s765 = scalar_lea.sflag [#allocation3], 1
    %766 = vsyncpa %s765, 1
    %767 = vsyncpa [#allocation6], 1
    %s768 = scalar_lea.sflag [#allocation6], 1
    %769 = vsyncpa %s768, 1
    %770 = vsyncpa [#allocation9], 1
    %771 = vsyncpa [#allocation12], 1
    %772 = vsyncpa [#allocation4], 1
    %s773 = scalar_lea.sflag [#allocation4], 1
    %774 = vsyncpa %s773, 1

</llo_original>
